<compile_context>
chip_gen: v5e
topology: v5e:2x2
jax: 0.10.0
libtpu: 0.0.40
codegen_flags: <defaults>
</compile_context>

<pallas_src>
import functools

import jax
import jax.numpy as jnp
from jax.experimental import pallas as pl
from jax.experimental.pallas import tpu as pltpu

ENCODED_DIM = 2
H1, H2, H3 = 64, 128, 256
OUTPUT_DIM = 10
PADDED_OUT = 128          # lane-dense output width (multiple of 128)
BATCH = 8
NEG_BIG = -1e30           # padded logit lanes -> exp underflows to exactly 0


def decoder_kernel(x_ref,
                   w1_ref, b1_ref,
                   w2_ref, b2_ref,
                   w3_ref, b3_ref,
                   w4p_ref, b4p_ref,
                   o_ref):
    x = x_ref[...]                                    # (TB, 2) f32

    # ---- fc1 (K=2): two VPU broadcast FMAs instead of a degenerate MXU tile.
    h = (x[:, 0:1] * w1_ref[0:1, :]
         + x[:, 1:2] * w1_ref[1:2, :]
         + b1_ref[...])
    h = jnp.maximum(h, 0.0)

    # ---- fc2 + ReLU (MXU)
    h = jnp.dot(h, w2_ref[...], preferred_element_type=jnp.float32) + b2_ref[...]
    h = jnp.maximum(h, 0.0)

    # ---- fc3 + ReLU (MXU)
    h = jnp.dot(h, w3_ref[...], preferred_element_type=jnp.float32) + b3_ref[...]
    h = jnp.maximum(h, 0.0)

    # ---- fc4 (MXU), padded to 128 lanes; padded lanes carry a huge negative
    #      bias so they vanish in the softmax.
    logits = (jnp.dot(h, w4p_ref[...], preferred_element_type=jnp.float32)
              + b4p_ref[...])

    # ---- numerically stable softmax over the lane-dense last dim.
    m = jnp.max(logits, axis=-1, keepdims=True)       # XLU cross-lane reduce
    e = jnp.exp(logits - m)                           # EUP
    denom = jnp.sum(e, axis=-1, keepdims=True)
    r = pl.reciprocal(denom, approx=True)             # EUP slot (free-ish)
    r = r * (2.0 - denom * r)                         # one Newton step -> ~f32 exact
    o_ref[...] = (e * r).astype(o_ref.dtype)


@functools.partial(jax.jit, static_argnames=("tb",))
def decoder_forward(x, params, *, tb=None):
    (w1, b1), (w2, b2), (w3, b3), (w4, b4) = params
    B = x.shape[0]

    # Batch tile: whole (padded) batch for tiny B, capped so VMEM stays small.
    if tb is None:
        tb = min(max(8, -(-B // 8) * 8), 512)
    Bp = -(-B // tb) * tb                              # round up to tile multiple
    if Bp != B:
        x = jnp.pad(x, ((0, Bp - B), (0, 0)))          # full blocks, no OOB garbage

    # Pad fc4 to a lane-dense (..., 128) output; padded lanes get a huge
    # negative bias so softmax assigns them exactly zero probability.
    w4p = jnp.zeros((H3, PADDED_OUT), jnp.float32).at[:, :OUTPUT_DIM].set(w4)
    b4p = jnp.full((1, PADDED_OUT), NEG_BIG, jnp.float32).at[:, :OUTPUT_DIM].set(b4[0])

    def resident(shape):
        # Same block index every grid step -> stays resident in VMEM, no re-DMA.
        return pl.BlockSpec(shape, lambda i: (0, 0))

    out_padded = pl.pallas_call(
        decoder_kernel,
        out_shape=jax.ShapeDtypeStruct((Bp, PADDED_OUT), jnp.float32),
        grid=(Bp // tb,),
        in_specs=[
            pl.BlockSpec((tb, ENCODED_DIM), lambda i: (i, 0)),
            resident((ENCODED_DIM, H1)), resident((1, H1)),
            resident((H1, H2)),          resident((1, H2)),
            resident((H2, H3)),          resident((1, H3)),
            resident((H3, PADDED_OUT)),  resident((1, PADDED_OUT)),
        ],
        out_specs=pl.BlockSpec((tb, PADDED_OUT), lambda i: (i, 0)),
        compiler_params=pltpu.CompilerParams(
            dimension_semantics=("parallel",)),
        cost_estimate=pl.CostEstimate(
            flops=2 * Bp * (ENCODED_DIM * H1 + H1 * H2 + H2 * H3 + H3 * PADDED_OUT),
            transcendentals=Bp * PADDED_OUT,
            bytes_accessed=4 * (Bp * ENCODED_DIM
                                + ENCODED_DIM * H1 + H1 * H2 + H2 * H3
                                + H3 * PADDED_OUT
                                + H1 + H2 + H3 + PADDED_OUT
                                + Bp * PADDED_OUT),
        ),
    )(x, w1, b1, w2, b2, w3, b3, w4p, b4p)

    # Slice back to the true batch / output width (lane-dense store happened
    # in-kernel; this slice is a tiny XLA copy).
    return out_padded[:B, :OUTPUT_DIM]


def decoder_reference(x, params):
    # Pure-JAX reference (matches the PyTorch forward).
    (w1, b1), (w2, b2), (w3, b3), (w4, b4) = params
    hp = jax.lax.Precision.HIGHEST
    h = jax.nn.relu(jnp.dot(x, w1, precision=hp) + b1)
    h = jax.nn.relu(jnp.dot(h, w2, precision=hp) + b2)
    h = jax.nn.relu(jnp.dot(h, w3, precision=hp) + b3)
    logits = jnp.dot(h, w4, precision=hp) + b4
    return jax.nn.softmax(logits, axis=-1)


def init_linear(key, fan_in, fan_out):
    # Deterministic init mimicking torch.nn.Linear default (uniform +-1/sqrt(fan_in)).
    kw, kb = jax.random.split(key)
    bound = 1.0 / jnp.sqrt(float(fan_in))
    # Stored as (in, out) so the kernel does x @ W; bias kept 2-D (1, out).
    w = jax.random.uniform(kw, (fan_in, fan_out), jnp.float32, -bound, bound)
    b = jax.random.uniform(kb, (1, fan_out), jnp.float32, -bound, bound)
    return w, b


if __name__ == "__main__":
    key = jax.random.PRNGKey(0)
    kx, k1, k2, k3, k4 = jax.random.split(key, 5)

    x = jax.random.normal(kx, (BATCH, ENCODED_DIM), jnp.float32)

    params = (
        init_linear(k1, ENCODED_DIM, H1),
        init_linear(k2, H1, H2),
        init_linear(k3, H2, H3),
        init_linear(k4, H3, OUTPUT_DIM),
    )

    out = decoder_forward(x, params)
    out = jax.block_until_ready(out)

    assert out.shape == (BATCH, OUTPUT_DIM)
    # Softmax rows sum to 1.
    assert jnp.allclose(jnp.sum(out, axis=-1), 1.0, atol=1e-4)
    # Match the pure-JAX reference of the PyTorch forward.
    ref = decoder_reference(x, params)
    assert jnp.allclose(out, ref, atol=1e-3, rtol=1e-3)

    print("KERNEL_OK")
</pallas_src>

<mosaic_0001>
module attributes {stable_mosaic.version = 11 : i64} {
  func.func @decoder_kernel(%arg0: i32, %arg1: memref<8x2xf32, #tpu.memory_space<vmem>>, %arg2: memref<2x64xf32, #tpu.memory_space<vmem>>, %arg3: memref<1x64xf32, #tpu.memory_space<vmem>>, %arg4: memref<64x128xf32, #tpu.memory_space<vmem>>, %arg5: memref<1x128xf32, #tpu.memory_space<vmem>>, %arg6: memref<128x256xf32, #tpu.memory_space<vmem>>, %arg7: memref<1x256xf32, #tpu.memory_space<vmem>>, %arg8: memref<256x128xf32, #tpu.memory_space<vmem>>, %arg9: memref<1x128xf32, #tpu.memory_space<vmem>>, %arg10: memref<8x128xf32, #tpu.memory_space<vmem>>) attributes {dimension_semantics = [#tpu.dimension_semantics<parallel>], iteration_bounds = array<i64: 1>, scalar_prefetch = 0 : i64, scratch_operands = 0 : i64, tpu.core_type = #tpu.core_type<tc>, window_params = [{transform_indices = @transform_0, window_bounds = array<i64: 8, 2>}, {pipeline_mode = #tpu.pipeline_mode<synchronous>, transform_indices = @transform_1, window_bounds = array<i64: 2, 64>}, {pipeline_mode = #tpu.pipeline_mode<synchronous>, transform_indices = @transform_2, window_bounds = array<i64: 1, 64>}, {pipeline_mode = #tpu.pipeline_mode<synchronous>, transform_indices = @transform_3, window_bounds = array<i64: 64, 128>}, {pipeline_mode = #tpu.pipeline_mode<synchronous>, transform_indices = @transform_4, window_bounds = array<i64: 1, 128>}, {pipeline_mode = #tpu.pipeline_mode<synchronous>, transform_indices = @transform_5, window_bounds = array<i64: 128, 256>}, {pipeline_mode = #tpu.pipeline_mode<synchronous>, transform_indices = @transform_6, window_bounds = array<i64: 1, 256>}, {pipeline_mode = #tpu.pipeline_mode<synchronous>, transform_indices = @transform_7, window_bounds = array<i64: 256, 128>}, {pipeline_mode = #tpu.pipeline_mode<synchronous>, transform_indices = @transform_8, window_bounds = array<i64: 1, 128>}, {transform_indices = @transform_9, window_bounds = array<i64: 8, 128>}]} {
    %c0 = arith.constant 0 : index
    %c0_0 = arith.constant 0 : index
    %0 = vector.load %arg1[%c0, %c0_0] : memref<8x2xf32, #tpu.memory_space<vmem>>, vector<8x2xf32>
    %1 = vector.extract_strided_slice %0 {offsets = [0, 0], sizes = [8, 1], strides = [1, 1]} : vector<8x2xf32> to vector<8x1xf32>
    %c0_1 = arith.constant 0 : index
    %c0_2 = arith.constant 0 : index
    %2 = vector.load %arg2[%c0_1, %c0_2] : memref<2x64xf32, #tpu.memory_space<vmem>>, vector<1x64xf32>
    %3 = vector.broadcast %1 : vector<8x1xf32> to vector<8x64xf32>
    %4 = vector.broadcast %2 : vector<1x64xf32> to vector<8x64xf32>
    %5 = arith.mulf %3, %4 : vector<8x64xf32>
    %6 = vector.extract_strided_slice %0 {offsets = [0, 1], sizes = [8, 1], strides = [1, 1]} : vector<8x2xf32> to vector<8x1xf32>
    %c1 = arith.constant 1 : index
    %c0_3 = arith.constant 0 : index
    %7 = vector.load %arg2[%c1, %c0_3] : memref<2x64xf32, #tpu.memory_space<vmem>>, vector<1x64xf32>
    %8 = vector.broadcast %6 : vector<8x1xf32> to vector<8x64xf32>
    %9 = vector.broadcast %7 : vector<1x64xf32> to vector<8x64xf32>
    %10 = arith.mulf %8, %9 : vector<8x64xf32>
    %11 = arith.addf %5, %10 : vector<8x64xf32>
    %c0_4 = arith.constant 0 : index
    %c0_5 = arith.constant 0 : index
    %12 = vector.load %arg3[%c0_4, %c0_5] : memref<1x64xf32, #tpu.memory_space<vmem>>, vector<1x64xf32>
    %13 = vector.broadcast %12 : vector<1x64xf32> to vector<8x64xf32>
    %14 = arith.addf %11, %13 : vector<8x64xf32>
    %cst = arith.constant 0.000000e+00 : f32
    %15 = vector.broadcast %cst : f32 to vector<8x64xf32>
    %16 = arith.maximumf %14, %15 : vector<8x64xf32>
    %c0_6 = arith.constant 0 : index
    %c0_7 = arith.constant 0 : index
    %17 = vector.load %arg4[%c0_6, %c0_7] : memref<64x128xf32, #tpu.memory_space<vmem>>, vector<64x128xf32>
    %cst_8 = arith.constant dense<0.000000e+00> : vector<8x128xf32>
    %18 = tpu.matmul %16, %17, %cst_8 {dimension_numbers = #tpu.dot_dimension_numbers<[1], [0], [0], [1], [0, 0, 1, 1], [], []>} : vector<8x64xf32>, vector<64x128xf32>, vector<8x128xf32> -> vector<8x128xf32>
    %c0_9 = arith.constant 0 : index
    %c0_10 = arith.constant 0 : index
    %19 = vector.load %arg5[%c0_9, %c0_10] : memref<1x128xf32, #tpu.memory_space<vmem>>, vector<1x128xf32>
    %20 = vector.broadcast %19 : vector<1x128xf32> to vector<8x128xf32>
    %21 = arith.addf %18, %20 : vector<8x128xf32>
    %cst_11 = arith.constant 0.000000e+00 : f32
    %22 = vector.broadcast %cst_11 : f32 to vector<8x128xf32>
    %23 = arith.maximumf %21, %22 : vector<8x128xf32>
    %c0_12 = arith.constant 0 : index
    %c0_13 = arith.constant 0 : index
    %24 = vector.load %arg6[%c0_12, %c0_13] : memref<128x256xf32, #tpu.memory_space<vmem>>, vector<128x256xf32>
    %cst_14 = arith.constant dense<0.000000e+00> : vector<8x256xf32>
    %25 = tpu.matmul %23, %24, %cst_14 {dimension_numbers = #tpu.dot_dimension_numbers<[1], [0], [0], [1], [0, 0, 1, 1], [], []>} : vector<8x128xf32>, vector<128x256xf32>, vector<8x256xf32> -> vector<8x256xf32>
    %c0_15 = arith.constant 0 : index
    %c0_16 = arith.constant 0 : index
    %26 = vector.load %arg7[%c0_15, %c0_16] : memref<1x256xf32, #tpu.memory_space<vmem>>, vector<1x256xf32>
    %27 = vector.broadcast %26 : vector<1x256xf32> to vector<8x256xf32>
    %28 = arith.addf %25, %27 : vector<8x256xf32>
    %cst_17 = arith.constant 0.000000e+00 : f32
    %29 = vector.broadcast %cst_17 : f32 to vector<8x256xf32>
    %30 = arith.maximumf %28, %29 : vector<8x256xf32>
    %c0_18 = arith.constant 0 : index
    %c0_19 = arith.constant 0 : index
    %31 = vector.load %arg8[%c0_18, %c0_19] : memref<256x128xf32, #tpu.memory_space<vmem>>, vector<256x128xf32>
    %cst_20 = arith.constant dense<0.000000e+00> : vector<8x128xf32>
    %32 = tpu.matmul %30, %31, %cst_20 {dimension_numbers = #tpu.dot_dimension_numbers<[1], [0], [0], [1], [0, 0, 1, 1], [], []>} : vector<8x256xf32>, vector<256x128xf32>, vector<8x128xf32> -> vector<8x128xf32>
    %c0_21 = arith.constant 0 : index
    %c0_22 = arith.constant 0 : index
    %33 = vector.load %arg9[%c0_21, %c0_22] : memref<1x128xf32, #tpu.memory_space<vmem>>, vector<1x128xf32>
    %34 = vector.broadcast %33 : vector<1x128xf32> to vector<8x128xf32>
    %35 = arith.addf %32, %34 : vector<8x128xf32>
    %cst_23 = arith.constant dense<0xFF800000> : vector<8xf32>
    %36 = vector.multi_reduction <maximumf>, %35, %cst_23 [1] : vector<8x128xf32> to vector<8xf32>
    %37 = vector.shape_cast %36 : vector<8xf32> to vector<8x1xf32>
    %38 = vector.broadcast %37 : vector<8x1xf32> to vector<8x128xf32>
    %39 = arith.subf %35, %38 : vector<8x128xf32>
    %40 = math.exp %39 : vector<8x128xf32>
    %cst_24 = arith.constant dense<0.000000e+00> : vector<8xf32>
    %41 = vector.multi_reduction <add>, %40, %cst_24 [1] : vector<8x128xf32> to vector<8xf32>
    %42 = vector.shape_cast %41 : vector<8xf32> to vector<8x1xf32>
    %43 = tpu.reciprocal %42 {approx = true} : vector<8x1xf32> -> vector<8x1xf32>
    %44 = arith.mulf %42, %43 : vector<8x1xf32>
    %cst_25 = arith.constant 2.000000e+00 : f32
    %45 = vector.broadcast %cst_25 : f32 to vector<8x1xf32>
    %46 = arith.subf %45, %44 : vector<8x1xf32>
    %47 = arith.mulf %43, %46 : vector<8x1xf32>
    %48 = vector.broadcast %47 : vector<8x1xf32> to vector<8x128xf32>
    %49 = arith.mulf %40, %48 : vector<8x128xf32>
    %c0_26 = arith.constant 0 : index
    %c0_27 = arith.constant 0 : index
    %50 = vector.load %arg10[%c0_26, %c0_27] : memref<8x128xf32, #tpu.memory_space<vmem>>, vector<8x128xf32>
    tpu.vector_store %arg10[%c0_26, %c0_27], %49 {strides = array<i32>} : memref<8x128xf32, #tpu.memory_space<vmem>>, vector<8x128xf32>,
    return
  }
  func.func @transform_0(%arg0: i32) -> (i32, i32) {
    %c0_i32 = arith.constant 0 : i32
    %c0_i32_0 = arith.constant 0 : i32
    return %arg0, %c0_i32 : i32, i32
  }
  func.func @transform_1(%arg0: i32) -> (i32, i32) {
    %c0_i32 = arith.constant 0 : i32
    %c0_i32_0 = arith.constant 0 : i32
    %c0_i32_1 = arith.constant 0 : i32
    return %c0_i32, %c0_i32_0 : i32, i32
  }
  func.func @transform_2(%arg0: i32) -> (i32, i32) {
    %c0_i32 = arith.constant 0 : i32
    %c0_i32_0 = arith.constant 0 : i32
    %c0_i32_1 = arith.constant 0 : i32
    return %c0_i32, %c0_i32_0 : i32, i32
  }
  func.func @transform_3(%arg0: i32) -> (i32, i32) {
    %c0_i32 = arith.constant 0 : i32
    %c0_i32_0 = arith.constant 0 : i32
    %c0_i32_1 = arith.constant 0 : i32
    return %c0_i32, %c0_i32_0 : i32, i32
  }
  func.func @transform_4(%arg0: i32) -> (i32, i32) {
    %c0_i32 = arith.constant 0 : i32
    %c0_i32_0 = arith.constant 0 : i32
    %c0_i32_1 = arith.constant 0 : i32
    return %c0_i32, %c0_i32_0 : i32, i32
  }
  func.func @transform_5(%arg0: i32) -> (i32, i32) {
    %c0_i32 = arith.constant 0 : i32
    %c0_i32_0 = arith.constant 0 : i32
    %c0_i32_1 = arith.constant 0 : i32
    return %c0_i32, %c0_i32_0 : i32, i32
  }
  func.func @transform_6(%arg0: i32) -> (i32, i32) {
    %c0_i32 = arith.constant 0 : i32
    %c0_i32_0 = arith.constant 0 : i32
    %c0_i32_1 = arith.constant 0 : i32
    return %c0_i32, %c0_i32_0 : i32, i32
  }
  func.func @transform_7(%arg0: i32) -> (i32, i32) {
    %c0_i32 = arith.constant 0 : i32
    %c0_i32_0 = arith.constant 0 : i32
    %c0_i32_1 = arith.constant 0 : i32
    return %c0_i32, %c0_i32_0 : i32, i32
  }
  func.func @transform_8(%arg0: i32) -> (i32, i32) {
    %c0_i32 = arith.constant 0 : i32
    %c0_i32_0 = arith.constant 0 : i32
    %c0_i32_1 = arith.constant 0 : i32
    return %c0_i32, %c0_i32_0 : i32, i32
  }
  func.func @transform_9(%arg0: i32) -> (i32, i32) {
    %c0_i32 = arith.constant 0 : i32
    %c0_i32_0 = arith.constant 0 : i32
    return %arg0, %c0_i32 : i32, i32
  }
}

</mosaic_0001>

<llo_original>
// kernel: decoder_forward.1
$region0: #{decoder_forward.1}
  #allocation0 [shape = 'u32[]', space=smem, size = 0x4, offset = 0x4, fixed_abs, tag = 'smem constant byte address 0x4 - core index']
  #allocation1 [shape = 'u32[72,128]{1,0:T(1,128)}', space=vmem, size = 0x9000, scoped, tag = 'internal scratch']
  %s0 = inlined_call_operand.vmem [shape: f32[8,2], index: 0, kind: input, shape index: {}]
  %s1 = inlined_call_operand.vmem [shape: f32[2,64], index: 1, kind: input, shape index: {}]
  %s2 = inlined_call_operand.vmem [shape: f32[1,64], index: 2, kind: input, shape index: {}]
  %s3 = inlined_call_operand.vmem [shape: f32[64,128], index: 3, kind: input, shape index: {}]
  %s4 = inlined_call_operand.vmem [shape: f32[1,128], index: 4, kind: input, shape index: {}]
  %s5 = inlined_call_operand.vmem [shape: f32[128,256], index: 5, kind: input, shape index: {}]
  %s6 = inlined_call_operand.vmem [shape: f32[1,256], index: 6, kind: input, shape index: {}]
  %s7 = inlined_call_operand.vmem [shape: f32[256,128], index: 7, kind: input, shape index: {}]
  %s8 = inlined_call_operand.vmem [shape: f32[1,128], index: 8, kind: input, shape index: {}]
  %s9 = inlined_call_operand.hbm [shape: f32[8,128], index: 9, kind: output, shape index: {}]
  %s10 = sld [smem:[#allocation0]]
  $region46: #{decoder_forward.1} parent=0
    _
  %s12 = ssub.s32 1, %s10
  %s13 = scalar_select 0, %s12, %s10
  $region1: #{decoder_forward.1} parent=0
    #allocation2 [shape = 'u8[4096]{0}', space=vmem, size = 0x1000, scoped, tag = 'output window, operand 0, single buffered']
    #allocation3 [shape = 's32[1]{0}', space=sflag, size = 0x4, scoped, tag = 'scoped memory for decoder_forward.1']
    %14 = vsyncpa [#allocation3], 0
    // Predicated region
    $region2: #{decoder_forward.1} parent=1 // pred_check
      _
    $region3: #{decoder_forward.1} parent=1 // pred_check_branch
      %16 = sbr.rel (0) target = $region5
    $region4: #{decoder_forward.1} parent=1 // pred_region
      _
    $region5: #{decoder_forward.1} parent=1 // pred_fallthru
      _
    // Predicated region
    $region6: #{decoder_forward.1} parent=1 // pred_check
      _
    $region7: #{decoder_forward.1} parent=1 // pred_check_branch
      %18 = sbr.rel (0) target = $region9
    $region8: #{decoder_forward.1} parent=1 // pred_region
      _
    $region9: #{decoder_forward.1} parent=1 // pred_fallthru
      _
    // Predicated region
    $region10: #{decoder_forward.1} parent=1 // pred_check
      _
    $region11: #{decoder_forward.1} parent=1 // pred_check_branch
      %20 = sbr.rel (0) target = $region13
    $region12: #{decoder_forward.1} parent=1 // pred_region
      _
    $region13: #{decoder_forward.1} parent=1 // pred_fallthru
      _
    // Predicated region
    $region14: #{decoder_forward.1} parent=1 // pred_check
      _
    $region15: #{decoder_forward.1} parent=1 // pred_check_branch
      %22 = sbr.rel (0) target = $region17
    $region16: #{decoder_forward.1} parent=1 // pred_region
      _
    $region17: #{decoder_forward.1} parent=1 // pred_fallthru
      _
    // Predicated region
    $region18: #{decoder_forward.1} parent=1 // pred_check
      _
    $region19: #{decoder_forward.1} parent=1 // pred_check_branch
      %24 = sbr.rel (0) target = $region21
    $region20: #{decoder_forward.1} parent=1 // pred_region
      _
    $region21: #{decoder_forward.1} parent=1 // pred_fallthru
      _
    // Predicated region
    $region22: #{decoder_forward.1} parent=1 // pred_check
      _
    $region23: #{decoder_forward.1} parent=1 // pred_check_branch
      %26 = sbr.rel (0) target = $region25
    $region24: #{decoder_forward.1} parent=1 // pred_region
      _
    $region25: #{decoder_forward.1} parent=1 // pred_fallthru
      _
    // Predicated region
    $region26: #{decoder_forward.1} parent=1 // pred_check
      _
    $region27: #{decoder_forward.1} parent=1 // pred_check_branch
      %28 = sbr.rel (0) target = $region29
    $region28: #{decoder_forward.1} parent=1 // pred_region
      _
    $region29: #{decoder_forward.1} parent=1 // pred_fallthru
      _
    // Predicated region
    $region30: #{decoder_forward.1} parent=1 // pred_check
      _
    $region31: #{decoder_forward.1} parent=1 // pred_check_branch
      %30 = sbr.rel (0) target = $region33
    $region32: #{decoder_forward.1} parent=1 // pred_region
      _
    $region33: #{decoder_forward.1} parent=1 // pred_fallthru
      _
    // Predicated region
    $region34: #{decoder_forward.1} parent=1 // pred_check
      _
    $region35: #{decoder_forward.1} parent=1 // pred_check_branch
      %32 = sbr.rel (0) target = $region37
    $region36: #{decoder_forward.1} parent=1 // pred_region
      _
    $region37: #{decoder_forward.1} parent=1 // pred_fallthru
      _
    %v33 = vld [vmem:[%s0] sm:$0xff]
    %v34 = vld [vmem:[%s1] sm:$0x1]
    %36 = vset.pattern.permute.xlu0 0
    %37 = vperm.xlu0 %36, %v33
    %v38 = vpop.permute.xlu0 %37
    %v40 = vperm.slane %v34, 0
    %v41 = vmul.f32 %v38, %v40
    %v42 = vld [vmem:[%s1 + $0x1] sm:$0x1]
    %43 = vset.pattern.permute.xlu0 1
    %44 = vperm.xlu0 %43, %v33
    %v45 = vpop.permute.xlu0 %44
    %v47 = vperm.slane %v42, 0
    %v48 = vmul.f32 %v45, %v47
    %v49 = vadd.f32 %v41, %v48
    %v50 = vld [vmem:[%s2] sm:$0x1]
    %v52 = vperm.slane %v50, 0
    %v54 = vadd.f32 %v49, %v52
    %v55 = vmax.f32 %v54, 0.0
    %v56 = vld [vmem:[%s3] sm:$0xff]
    %v57 = vld [vmem:[%s3 + $0x8] sm:$0xff]
    %v58 = vld [vmem:[%s3 + $0x10] sm:$0xff]
    %v59 = vld [vmem:[%s3 + $0x18] sm:$0xff]
    %v60 = vld [vmem:[%s3 + $0x20] sm:$0xff]
    %v61 = vld [vmem:[%s3 + $0x28] sm:$0xff]
    %v62 = vld [vmem:[%s3 + $0x30] sm:$0xff]
    %v63 = vld [vmem:[%s3 + $0x38] sm:$0xff]
    %v64 = vld [vmem:[%s4] sm:$0x1]
    %v66 = vperm.slane %v64, 0
    %vm68 = vcmask 523264
    %v70 = vsel %vm68, %v55, 0
    %72 = vmatpush.msra.mxu0 0.0
    %73 = vmatpush.msra.mxu0 0.0
    %74 = vmatpush.msra.mxu0 0.0
    %75 = vmatpush.msra.mxu0 0.0
    %76 = vmatpush.msra.mxu0 0.0
    %77 = vmatpush.msra.mxu0 0.0
    %78 = vmatpush.msra.mxu0 0.0
    %79 = vmatpush.msra.mxu0 0.0
    %80 = vmatpush.msra.mxu0 %v63
    %81 = vmatpush.msra.mxu0 %v62
    %82 = vmatpush.msra.mxu0 %v61
    %83 = vmatpush.msra.mxu0 %v60
    %84 = vmatpush.msra.mxu0 %v59
    %85 = vmatpush.msra.mxu0 %v58
    %86 = vmatpush.msra.mxu0 %v57
    %87 = vmatpush.msra.mxu0 %v56
    %88 = vmatmul.f32.gmra.mxu0 %v70
    %v89 = vpop.f32.mrf.mxu0
    %v90 = vadd.f32 %v66, %v89
    %91 = vdwg.mxu0
    %v92 = vmax.f32 %v90, 0.0
    %v93 = vld [vmem:[%s5] sm:$0xff]
    %v94 = vld [vmem:[%s5 + $0x8] sm:$0xff]
    %v95 = vld [vmem:[%s5 + $0x10] sm:$0xff]
    %v96 = vld [vmem:[%s5 + $0x18] sm:$0xff]
    %v97 = vld [vmem:[%s5 + $0x20] sm:$0xff]
    %v98 = vld [vmem:[%s5 + $0x28] sm:$0xff]
    %v99 = vld [vmem:[%s5 + $0x30] sm:$0xff]
    %v100 = vld [vmem:[%s5 + $0x38] sm:$0xff]
    %v101 = vld [vmem:[%s5 + $0x40] sm:$0xff]
    %v102 = vld [vmem:[%s5 + $0x48] sm:$0xff]
    %v103 = vld [vmem:[%s5 + $0x50] sm:$0xff]
    %v104 = vld [vmem:[%s5 + $0x58] sm:$0xff]
    %v105 = vld [vmem:[%s5 + $0x60] sm:$0xff]
    %v106 = vld [vmem:[%s5 + $0x68] sm:$0xff]
    %v107 = vld [vmem:[%s5 + $0x70] sm:$0xff]
    %v108 = vld [vmem:[%s5 + $0x78] sm:$0xff]
    %v109 = vld [vmem:[%s5 + $0x80] sm:$0xff]
    %v110 = vld [vmem:[%s5 + $0x88] sm:$0xff]
    %v111 = vld [vmem:[%s5 + $0x90] sm:$0xff]
    %v112 = vld [vmem:[%s5 + $0x98] sm:$0xff]
    %v113 = vld [vmem:[%s5 + $0xa0] sm:$0xff]
    %v114 = vld [vmem:[%s5 + $0xa8] sm:$0xff]
    %v115 = vld [vmem:[%s5 + $0xb0] sm:$0xff]
    %v116 = vld [vmem:[%s5 + $0xb8] sm:$0xff]
    %v117 = vld [vmem:[%s5 + $0xc0] sm:$0xff]
    %v118 = vld [vmem:[%s5 + $0xc8] sm:$0xff]
    %v119 = vld [vmem:[%s5 + $0xd0] sm:$0xff]
    %v120 = vld [vmem:[%s5 + $0xd8] sm:$0xff]
    %v121 = vld [vmem:[%s5 + $0xe0] sm:$0xff]
    %v122 = vld [vmem:[%s5 + $0xe8] sm:$0xff]
    %v123 = vld [vmem:[%s5 + $0xf0] sm:$0xff]
    %v124 = vld [vmem:[%s5 + $0xf8] sm:$0xff]
    %v125 = vld [vmem:[%s6] sm:$0x3]
    %v127 = vperm.slane %v125, 0
    %v128 = vperm.slane %v125, 1
    %131 = vmatpush.msra.mxu0 %v123
    %132 = vmatpush.msra.mxu0 %v121
    %133 = vmatpush.msra.mxu0 %v119
    %134 = vmatpush.msra.mxu0 %v117
    %135 = vmatpush.msra.mxu0 %v115
    %136 = vmatpush.msra.mxu0 %v113
    %137 = vmatpush.msra.mxu0 %v111
    %138 = vmatpush.msra.mxu0 %v109
    %139 = vmatpush.msra.mxu0 %v107
    %140 = vmatpush.msra.mxu0 %v105
    %141 = vmatpush.msra.mxu0 %v103
    %142 = vmatpush.msra.mxu0 %v101
    %143 = vmatpush.msra.mxu0 %v99
    %144 = vmatpush.msra.mxu0 %v97
    %145 = vmatpush.msra.mxu0 %v95
    %146 = vmatpush.msra.mxu0 %v93
    %147 = vmatmul.f32.gmra.mxu0 %v92
    %v148 = vpop.f32.mrf.mxu0
    %v149 = vadd.f32 %v127, %v148
    %150 = vdwg.mxu0
    %151 = vmatpush.msra.mxu0 %v124
    %152 = vmatpush.msra.mxu0 %v122
    %153 = vmatpush.msra.mxu0 %v120
    %154 = vmatpush.msra.mxu0 %v118
    %155 = vmatpush.msra.mxu0 %v116
    %156 = vmatpush.msra.mxu0 %v114
    %157 = vmatpush.msra.mxu0 %v112
    %158 = vmatpush.msra.mxu0 %v110
    %159 = vmatpush.msra.mxu0 %v108
    %160 = vmatpush.msra.mxu0 %v106
    %161 = vmatpush.msra.mxu0 %v104
    %162 = vmatpush.msra.mxu0 %v102
    %163 = vmatpush.msra.mxu0 %v100
    %164 = vmatpush.msra.mxu0 %v98
    %165 = vmatpush.msra.mxu0 %v96
    %166 = vmatpush.msra.mxu0 %v94
    %167 = vmatmul.f32.gmra.mxu0 %v92
    %v168 = vpop.f32.mrf.mxu0
    %v169 = vadd.f32 %v128, %v168
    %170 = vdwg.mxu0
    %v171 = vmax.f32 %v149, 0.0
    %v172 = vmax.f32 %v169, 0.0
    %v173 = vld [vmem:[%s7] sm:$0xff]
    %v174 = vld [vmem:[%s7 + $0x8] sm:$0xff]
    %v175 = vld [vmem:[%s7 + $0x10] sm:$0xff]
    %v176 = vld [vmem:[%s7 + $0x18] sm:$0xff]
    %v177 = vld [vmem:[%s7 + $0x20] sm:$0xff]
    %v178 = vld [vmem:[%s7 + $0x28] sm:$0xff]
    %v179 = vld [vmem:[%s7 + $0x30] sm:$0xff]
    %v180 = vld [vmem:[%s7 + $0x38] sm:$0xff]
    %v181 = vld [vmem:[%s7 + $0x40] sm:$0xff]
    %v182 = vld [vmem:[%s7 + $0x48] sm:$0xff]
    %v183 = vld [vmem:[%s7 + $0x50] sm:$0xff]
    %v184 = vld [vmem:[%s7 + $0x58] sm:$0xff]
    %v185 = vld [vmem:[%s7 + $0x60] sm:$0xff]
    %v186 = vld [vmem:[%s7 + $0x68] sm:$0xff]
    %v187 = vld [vmem:[%s7 + $0x70] sm:$0xff]
    %v188 = vld [vmem:[%s7 + $0x78] sm:$0xff]
    %v189 = vld [vmem:[%s7 + $0x80] sm:$0xff]
    %v190 = vld [vmem:[%s7 + $0x88] sm:$0xff]
    %v191 = vld [vmem:[%s7 + $0x90] sm:$0xff]
    %v192 = vld [vmem:[%s7 + $0x98] sm:$0xff]
    %v193 = vld [vmem:[%s7 + $0xa0] sm:$0xff]
    %v194 = vld [vmem:[%s7 + $0xa8] sm:$0xff]
    %v195 = vld [vmem:[%s7 + $0xb0] sm:$0xff]
    %v196 = vld [vmem:[%s7 + $0xb8] sm:$0xff]
    %v197 = vld [vmem:[%s7 + $0xc0] sm:$0xff]
    %v198 = vld [vmem:[%s7 + $0xc8] sm:$0xff]
    %v199 = vld [vmem:[%s7 + $0xd0] sm:$0xff]
    %v200 = vld [vmem:[%s7 + $0xd8] sm:$0xff]
    %v201 = vld [vmem:[%s7 + $0xe0] sm:$0xff]
    %v202 = vld [vmem:[%s7 + $0xe8] sm:$0xff]
    %v203 = vld [vmem:[%s7 + $0xf0] sm:$0xff]
    %v204 = vld [vmem:[%s7 + $0xf8] sm:$0xff]
    %v205 = vld [vmem:[%s8] sm:$0x1]
    %v207 = vperm.slane %v205, 0
    %209 = vmatpush.msra.mxu0 %v188
    %210 = vmatpush.msra.mxu0 %v187
    %211 = vmatpush.msra.mxu0 %v186
    %212 = vmatpush.msra.mxu0 %v185
    %213 = vmatpush.msra.mxu0 %v184
    %214 = vmatpush.msra.mxu0 %v183
    %215 = vmatpush.msra.mxu0 %v182
    %216 = vmatpush.msra.mxu0 %v181
    %217 = vmatpush.msra.mxu0 %v180
    %218 = vmatpush.msra.mxu0 %v179
    %219 = vmatpush.msra.mxu0 %v178
    %220 = vmatpush.msra.mxu0 %v177
    %221 = vmatpush.msra.mxu0 %v176
    %222 = vmatpush.msra.mxu0 %v175
    %223 = vmatpush.msra.mxu0 %v174
    %224 = vmatpush.msra.mxu0 %v173
    %225 = vmatmul.f32.gmra.mxu0 %v171
    %v226 = vpop.f32.mrf.mxu0
    %v227 = vadd.f32 %v207, %v226
    %228 = vdwg.mxu0
    %229 = vmatpush.msra.mxu0 %v204
    %230 = vmatpush.msra.mxu0 %v203
    %231 = vmatpush.msra.mxu0 %v202
    %232 = vmatpush.msra.mxu0 %v201
    %233 = vmatpush.msra.mxu0 %v200
    %234 = vmatpush.msra.mxu0 %v199
    %235 = vmatpush.msra.mxu0 %v198
    %236 = vmatpush.msra.mxu0 %v197
    %237 = vmatpush.msra.mxu0 %v196
    %238 = vmatpush.msra.mxu0 %v195
    %239 = vmatpush.msra.mxu0 %v194
    %240 = vmatpush.msra.mxu0 %v193
    %241 = vmatpush.msra.mxu0 %v192
    %242 = vmatpush.msra.mxu0 %v191
    %243 = vmatpush.msra.mxu0 %v190
    %244 = vmatpush.msra.mxu0 %v189
    %245 = vmatmul.f32.gmra.mxu0 %v172
    %v246 = vpop.f32.mrf.mxu0
    %v247 = vadd.f32 %v227, %v246
    %248 = vdwg.mxu0
    %249 = vmax.xlane.f32.xlu0 %v247
    %v250 = vpop.xlane.xlu0 %249
    %v251 = vsub.f32 %v247, %v250
    %v252 = vmul.f32 %v251, 1.442695
    %v253 = vpow.pop %v252
    %254 = vadd.xlane.f32.xlu0 %v253
    %v255 = vpop.xlane.xlu0 %254
    %v256 = vrcp.pop %v255
    %v257 = vmul.f32 %v255, %v256
    %v258 = vsub.f32 2.0, %v257
    %v259 = vmul.f32 %v256, %v258
    %v260 = vmul.f32 %v253, %v259
    %261 = vst [vmem:[#allocation2] sm:$0xff] %v260
    // Predicated region
    $region38: #{decoder_forward.1} parent=1 // pred_check
      _
    $region39: #{decoder_forward.1} parent=1 // pred_check_branch
      %263 = sbr.rel (0) target = $region41
    $region40: #{decoder_forward.1} parent=1 // pred_region
      %265 = vsyncadd [#allocation3], 0
      %s267 = sshll.u32 [#allocation2], 4
      %s268 = int_to_ptr.vmem [resolvable:$true] %s267
      %s269 = sshll.u32 %s9, 4
      %s270 = int_to_ptr.hbm [resolvable:$true] %s269
      %272 = dma.vmem_to_hbm [thread:$0]  %s268, 128, %s270, [#allocation3]
    $region41: #{decoder_forward.1} parent=1 // pred_fallthru
      _
    // Predicated region
    $region42: #{decoder_forward.1} parent=1 // pred_check
      _
    $region43: #{decoder_forward.1} parent=1 // pred_check_branch
      %274 = sbr.rel (0) target = $region45
    $region44: #{decoder_forward.1} parent=1 // pred_region
      %276 = dma.done [#allocation3], 128
    $region45: #{decoder_forward.1} parent=1 // pred_fallthru
      _
    %277 = vsyncpa [#allocation3], 1

</llo_original>
